<compile_context>
chip_gen: v7x
topology: tpu7x:2x2x1
jax: 0.10.0
libtpu: 0.0.40
codegen_flags: <defaults>
</compile_context>

<pallas_src>
import math
from functools import partial

import numpy as np
import jax
import jax.numpy as jnp
from jax import lax
from jax.experimental import pallas as pl
from jax.experimental.pallas import tpu as pltpu


# ---------------------------------------------------------------------------
# M-tiled Linear (used for fused QKV projection and for the output dense)
# ---------------------------------------------------------------------------
def _linear_bias_kernel(x_ref, w_ref, b_ref, o_ref):
    # bf16 MXU inputs, f32 accumulation, f32 bias add before the final cast.
    x = x_ref[...].astype(jnp.bfloat16)
    acc = jnp.dot(x, w_ref[...], preferred_element_type=jnp.float32)
    o_ref[...] = (acc + b_ref[...]).astype(o_ref.dtype)


def pallas_linear(x2d, w_kn, b_n, *, tile_m=512):
    """out = x2d @ w_kn + b_n.   x2d: (M, K), w_kn: (K, N), b_n: (N,)."""
    M, K = x2d.shape
    K2, N = w_kn.shape
    assert K == K2
    tm = min(tile_m, M)
    m_pad = pl.cdiv(M, tm) * tm
    x_p = jnp.pad(x2d, ((0, m_pad - M), (0, 0))) if m_pad != M else x2d
    out = pl.pallas_call(
        _linear_bias_kernel,
        out_shape=jax.ShapeDtypeStruct((m_pad, N), x2d.dtype),
        grid=(m_pad // tm,),
        in_specs=[
            pl.BlockSpec((tm, K), lambda m: (m, 0)),   # activations: streamed
            pl.BlockSpec((K, N), lambda m: (0, 0)),    # weights: VMEM-resident
            pl.BlockSpec((1, N), lambda m: (0, 0)),    # bias:    VMEM-resident
        ],
        out_specs=pl.BlockSpec((tm, N), lambda m: (m, 0)),
        compiler_params=pltpu.CompilerParams(dimension_semantics=("parallel",)),
    )(x_p, w_kn.astype(jnp.bfloat16), b_n.reshape(1, N).astype(jnp.float32))
    return out[:M] if m_pad != M else out


# ---------------------------------------------------------------------------
# NATTEN window / relative-position-bias start index rules (host-side, static)
# ---------------------------------------------------------------------------
def _win_start(index, length, kernel_size, dilation):
    nb = kernel_size // 2
    if dilation <= 1:
        start = max(index - nb, 0)
        if index + nb >= length:
            start += length - index - nb - 1
        return start
    ni = index - nb * dilation
    if ni < 0:
        return index % dilation
    if index + nb * dilation >= length:
        imodd = index % dilation
        a = (length // dilation) * dilation
        b = length - a
        if imodd < b:
            return length - b + imodd - 2 * nb * dilation
        return a + imodd - kernel_size * dilation
    return ni


def _pb_start(index, length, kernel_size, dilation):
    nb = kernel_size // 2
    if dilation <= 1:
        start = nb
        if index < nb:
            start += nb - index
        if index + nb >= length:
            start += length - index - 1 - nb
        return start
    if index - nb * dilation < 0:
        return kernel_size - 1 - (index // dilation)
    if index + nb * dilation >= length:
        return (length - index - 1) // dilation
    return nb


# ---------------------------------------------------------------------------
# Neighborhood-attention core kernel: one query row per grid step
# ---------------------------------------------------------------------------
def _natten_kernel(winh_ref, q_ref, k_ref, v_ref, cw_ref, rpb_ref, o_ref, *,
                   kernel_size, dilation):
    K = kernel_size
    i = pl.program_id(1)                    # query row index
    ni = winh_ref[i]                        # row-window start (SMEM scalar)
    q = q_ref[...].astype(jnp.float32)      # (W, Dh); query already pre-scaled
    rpb = rpb_ref[...]                      # (W, K*K) f32 relative-position bias
    cw = [cw_ref[t] for t in range(K)]      # K one-hot (W, W) column gathers

    # --- scores: s[j, kh*K+kw] = q[j,:] . k[ni+kh*dil, win_w[j]+kw*dil, :] + rpb
    scores = []
    for kh in range(K):
        r = ni + kh * dilation
        krow = k_ref[r].astype(jnp.float32)  # (W, Dh), dynamic key row
        a = lax.dot_general(q, krow, (((1,), (1,)), ((), ())),
                            preferred_element_type=jnp.float32)       # (Wq, Wk)
        for kw in range(K):
            t = kh * K + kw
            s = jnp.sum(a * cw[kw], axis=-1, keepdims=True)           # (W, 1)
            scores.append(s + rpb[:, t:t + 1])

    # --- softmax over the K*K taps (kept as a list of (W, 1) columns)
    m = scores[0]
    for s in scores[1:]:
        m = jnp.maximum(m, s)
    exps = [jnp.exp(s - m) for s in scores]
    denom = exps[0]
    for e in exps[1:]:
        denom = denom + e
    inv = pl.reciprocal(denom, approx=True)
    probs = [e * inv for e in exps]

    # --- AV: out[j,:] += sum_kw p[j, kh*K+kw] * v[r, win_w[j]+kw*dil, :]
    out = jnp.zeros(q.shape, jnp.float32)
    for kh in range(K):
        r = ni + kh * dilation
        vrow = v_ref[r].astype(jnp.float32)  # (W, Dh)
        wmat = probs[kh * K + 0] * cw[0]
        for kw in range(1, K):
            wmat = wmat + probs[kh * K + kw] * cw[kw]
        out = out + jnp.dot(wmat, vrow, preferred_element_type=jnp.float32)

    o_ref[...] = out.astype(o_ref.dtype)


# ---------------------------------------------------------------------------
# Full module forward
# ---------------------------------------------------------------------------
def neighborhood_attention_module(hidden_states, params, *, num_heads,
                                  kernel_size, dilation):
    B, H, W, dim = hidden_states.shape
    nh, K, d = num_heads, kernel_size, dilation
    Dh = dim // nh
    KK = K * K
    scale = 1.0 / math.sqrt(Dh)

    # ---- fused QKV projection (query scale folded into the weights) ----
    w_qkv = jnp.concatenate([(params["q_w"] * scale).T,
                             params["k_w"].T,
                             params["v_w"].T], axis=1)              # (dim, 3*dim)
    b_qkv = jnp.concatenate([params["q_b"] * scale, params["k_b"], params["v_b"]])
    qkv = pallas_linear(hidden_states.reshape(B * H * W, dim), w_qkv, b_qkv)

    # split into per-head maps (B*nh, H, W, Dh)
    # TODO(synk): this relayout is a small XLA transpose; it could be folded
    # into the natten kernel's BlockSpecs if Dh were a 128-lane multiple.
    qkv = qkv.reshape(B, H, W, 3, nh, Dh).transpose(3, 0, 4, 1, 2, 5)
    q = qkv[0].reshape(B * nh, H, W, Dh)
    k = qkv[1].reshape(B * nh, H, W, Dh)
    v = qkv[2].reshape(B * nh, H, W, Dh)

    # ---- static neighborhood index tables (exact NATTEN rules) ----
    win_h = np.array([_win_start(i, H, K, d) for i in range(H)], np.int32)
    win_w = np.array([_win_start(j, W, K, d) for j in range(W)], np.int32)
    pb_h = np.array([_pb_start(i, H, K, d) for i in range(H)], np.int32)
    pb_w = np.array([_pb_start(j, W, K, d) for j in range(W)], np.int32)

    cw = np.zeros((K, W, W), np.float32)      # one-hot column-gather matrices
    for kw in range(K):
        cw[kw, np.arange(W), win_w + kw * d] = 1.0

    ph = pb_h[:, None] + np.arange(K)[None, :]            # (H, K)
    pw = pb_w[:, None] + np.arange(K)[None, :]            # (W, K)
    rpb_g = params["rpb"][:, ph[:, None, :, None], pw[None, :, None, :]]
    rpb_g = rpb_g.reshape(nh, H, W, KK).astype(jnp.float32)

    # ---- neighborhood attention core ----
    context = pl.pallas_call(
        partial(_natten_kernel, kernel_size=K, dilation=d),
        out_shape=jax.ShapeDtypeStruct((B * nh, H, W, Dh), jnp.float32),
        grid_spec=pltpu.PrefetchScalarGridSpec(
            num_scalar_prefetch=1,
            grid=(B * nh, H),
            in_specs=[
                # query row of this (batch, head)
                pl.BlockSpec((None, None, W, Dh), lambda bh, i, wh: (bh, i, 0, 0)),
                # full K / V maps of this (batch, head): resident across rows
                pl.BlockSpec((None, H, W, Dh), lambda bh, i, wh: (bh, 0, 0, 0)),
                pl.BlockSpec((None, H, W, Dh), lambda bh, i, wh: (bh, 0, 0, 0)),
                # one-hot column gather matrices: resident everywhere
                pl.BlockSpec((K, W, W), lambda bh, i, wh: (0, 0, 0)),
                # pre-gathered relative position bias row for this head
                pl.BlockSpec((None, None, W, KK),
                             lambda bh, i, wh: (bh % nh, i, 0, 0)),
            ],
            out_specs=pl.BlockSpec((None, None, W, Dh),
                                   lambda bh, i, wh: (bh, i, 0, 0)),
        ),
        compiler_params=pltpu.CompilerParams(
            dimension_semantics=("parallel", "arbitrary")),
    )(jnp.asarray(win_h), q, k, v, jnp.asarray(cw), rpb_g)

    # ---- merge heads + output projection ----
    ctx = context.reshape(B, nh, H, W, Dh).transpose(0, 2, 3, 1, 4)
    ctx = ctx.reshape(B * H * W, dim)
    out = pallas_linear(ctx, params["o_w"].T, params["o_b"])
    # TODO(synk): dropout layers are identity at inference and are omitted.
    return out.reshape(B, H, W, dim)


# ---------------------------------------------------------------------------
# Pure-JAX reference (mirrors natten2dqkrpb / natten2dav semantics)
# ---------------------------------------------------------------------------
def _ref_forward(x, params, *, num_heads, kernel_size, dilation):
    B, H, W, dim = x.shape
    nh, K, d = num_heads, kernel_size, dilation
    Dh = dim // nh

    def lin(t, w, b):
        return t @ w.T + b

    def heads(t):
        return t.reshape(B, H, W, nh, Dh).transpose(0, 3, 1, 2, 4)

    q = heads(lin(x, params["q_w"], params["q_b"])) / math.sqrt(Dh)
    k = heads(lin(x, params["k_w"], params["k_b"]))
    v = heads(lin(x, params["v_w"], params["v_b"]))

    win_h = np.array([_win_start(i, H, K, d) for i in range(H)])
    win_w = np.array([_win_start(j, W, K, d) for j in range(W)])
    pb_h = np.array([_pb_start(i, H, K, d) for i in range(H)])
    pb_w = np.array([_pb_start(j, W, K, d) for j in range(W)])
    hi = win_h[:, None] + np.arange(K) * d               # (H, K)
    wi = win_w[:, None] + np.arange(K) * d               # (W, K)

    k_nb = k[:, :, hi[:, :, None, None], wi[None, None, :, :], :]  # (B,nh,H,K,W,K,Dh)
    v_nb = v[:, :, hi[:, :, None, None], wi[None, None, :, :], :]
    scores = jnp.einsum("bnijd,bnixjyd->bnijxy", q, k_nb)
    ph = pb_h[:, None] + np.arange(K)
    pw = pb_w[:, None] + np.arange(K)
    rpb_g = params["rpb"][:, ph[:, None, :, None], pw[None, :, None, :]]  # (nh,H,W,K,K)
    scores = scores + rpb_g[None]
    probs = jax.nn.softmax(scores.reshape(B, nh, H, W, K * K), axis=-1)
    probs = probs.reshape(B, nh, H, W, K, K)
    ctx = jnp.einsum("bnijxy,bnixjyd->bnijd", probs, v_nb)
    ctx = ctx.transpose(0, 2, 3, 1, 4).reshape(B, H, W, dim)
    return lin(ctx, params["o_w"], params["o_b"])


if __name__ == "__main__":
    key = jax.random.PRNGKey(0)
    B, H, W = 2, 8, 8
    dim, num_heads, kernel_size, dilation = 32, 2, 3, 1
    ks = jax.random.split(key, 10)

    hidden_states = jax.random.normal(ks[0], (B, H, W, dim), jnp.float32)
    params = {
        "q_w": 0.1 * jax.random.normal(ks[1], (dim, dim), jnp.float32),
        "q_b": 0.05 * jax.random.normal(ks[2], (dim,), jnp.float32),
        "k_w": 0.1 * jax.random.normal(ks[3], (dim, dim), jnp.float32),
        "k_b": 0.05 * jax.random.normal(ks[4], (dim,), jnp.float32),
        "v_w": 0.1 * jax.random.normal(ks[5], (dim, dim), jnp.float32),
        "v_b": 0.05 * jax.random.normal(ks[6], (dim,), jnp.float32),
        "o_w": 0.1 * jax.random.normal(ks[7], (dim, dim), jnp.float32),
        "o_b": 0.05 * jax.random.normal(ks[8], (dim,), jnp.float32),
        "rpb": 0.1 * jax.random.normal(
            ks[9], (num_heads, 2 * kernel_size - 1, 2 * kernel_size - 1),
            jnp.float32),
    }

    fwd = partial(neighborhood_attention_module, num_heads=num_heads,
                  kernel_size=kernel_size, dilation=dilation)
    out = jax.block_until_ready(fwd(hidden_states, params))
    assert out.shape == (B, H, W, dim), out.shape

    ref = _ref_forward(hidden_states, params, num_heads=num_heads,
                       kernel_size=kernel_size, dilation=dilation)
    # bf16 MXU projections (f32 accumulation) -> loose-but-safe tolerance.
    assert jnp.allclose(out, ref, atol=2e-2, rtol=2e-2), \
        float(jnp.max(jnp.abs(out - ref)))

    print("KERNEL_OK")
</pallas_src>

<mosaic_0001>
module attributes {stable_mosaic.version = 11 : i64} {
  func.func @_linear_bias_kernel(%arg0: i32, %arg1: memref<128x32xf32, #tpu.memory_space<vmem>>, %arg2: memref<32x96xbf16, #tpu.memory_space<vmem>>, %arg3: memref<1x96xf32, #tpu.memory_space<vmem>>, %arg4: memref<128x96xf32, #tpu.memory_space<vmem>>) attributes {dimension_semantics = [#tpu.dimension_semantics<parallel>], iteration_bounds = array<i64: 1>, scalar_prefetch = 0 : i64, scratch_operands = 0 : i64, tpu.core_type = #tpu.core_type<tc>, window_params = [{transform_indices = @transform_0, window_bounds = array<i64: 128, 32>}, {pipeline_mode = #tpu.pipeline_mode<synchronous>, transform_indices = @transform_1, window_bounds = array<i64: 32, 96>}, {pipeline_mode = #tpu.pipeline_mode<synchronous>, transform_indices = @transform_2, window_bounds = array<i64: 1, 96>}, {transform_indices = @transform_3, window_bounds = array<i64: 128, 96>}]} {
    %c0 = arith.constant 0 : index
    %c0_0 = arith.constant 0 : index
    %0 = vector.load %arg1[%c0, %c0_0] : memref<128x32xf32, #tpu.memory_space<vmem>>, vector<128x32xf32>
    %1 = arith.truncf %0 : vector<128x32xf32> to vector<128x32xbf16>
    %c0_1 = arith.constant 0 : index
    %c0_2 = arith.constant 0 : index
    %2 = vector.load %arg2[%c0_1, %c0_2] : memref<32x96xbf16, #tpu.memory_space<vmem>>, vector<32x96xbf16>
    %cst = arith.constant dense<0.000000e+00> : vector<128x96xf32>
    %3 = tpu.matmul %1, %2, %cst {dimension_numbers = #tpu.dot_dimension_numbers<[1], [0], [0], [1], [0, 0, 1, 1], [], []>} : vector<128x32xbf16>, vector<32x96xbf16>, vector<128x96xf32> -> vector<128x96xf32>
    %c0_3 = arith.constant 0 : index
    %c0_4 = arith.constant 0 : index
    %4 = vector.load %arg3[%c0_3, %c0_4] : memref<1x96xf32, #tpu.memory_space<vmem>>, vector<1x96xf32>
    %5 = vector.broadcast %4 : vector<1x96xf32> to vector<128x96xf32>
    %6 = arith.addf %3, %5 : vector<128x96xf32>
    %c0_5 = arith.constant 0 : index
    %c0_6 = arith.constant 0 : index
    %7 = vector.load %arg4[%c0_5, %c0_6] : memref<128x96xf32, #tpu.memory_space<vmem>>, vector<128x96xf32>
    tpu.vector_store %arg4[%c0_5, %c0_6], %6 {strides = array<i32>} : memref<128x96xf32, #tpu.memory_space<vmem>>, vector<128x96xf32>,
    return
  }
  func.func @transform_0(%arg0: i32) -> (i32, i32) {
    %c0_i32 = arith.constant 0 : i32
    %c0_i32_0 = arith.constant 0 : i32
    return %arg0, %c0_i32 : i32, i32
  }
  func.func @transform_1(%arg0: i32) -> (i32, i32) {
    %c0_i32 = arith.constant 0 : i32
    %c0_i32_0 = arith.constant 0 : i32
    %c0_i32_1 = arith.constant 0 : i32
    return %c0_i32, %c0_i32_0 : i32, i32
  }
  func.func @transform_2(%arg0: i32) -> (i32, i32) {
    %c0_i32 = arith.constant 0 : i32
    %c0_i32_0 = arith.constant 0 : i32
    %c0_i32_1 = arith.constant 0 : i32
    return %c0_i32, %c0_i32_0 : i32, i32
  }
  func.func @transform_3(%arg0: i32) -> (i32, i32) {
    %c0_i32 = arith.constant 0 : i32
    %c0_i32_0 = arith.constant 0 : i32
    return %arg0, %c0_i32 : i32, i32
  }
}

</mosaic_0001>

<llo_original>
// kernel: tpu_custom_call.1
$region0: #{tpu_custom_call.1}
  #allocation0 [shape = 'u32[]', space=smem, size = 0x4, offset = 0x4, fixed_abs, tag = 'smem constant byte address 0x4 - core index']
  #allocation1 [shape = 'u32[144,128]{1,0:T(1,128)}', space=vmem, size = 0x12000, scoped, tag = 'internal scratch']
  %s0 = inlined_call_operand.vmem [shape: f32[128,32], index: 0, kind: input, shape index: {}]
  %s1 = inlined_call_operand.vmem [shape: bf16[32,96], index: 1, kind: input, shape index: {}]
  %s2 = inlined_call_operand.vmem [shape: f32[1,96], index: 2, kind: input, shape index: {}]
  %s3 = inlined_call_operand.vmem [shape: f32[128,96], index: 3, kind: output, shape index: {}]
  %s4 = sld [smem:[#allocation0]]
  $region22: #{tpu_custom_call.1} parent=0
    _
  %s6 = ssub.s32 1, %s4
  %s7 = scalar_select 0, %s6, %s4
  // Predicated region
  $region2: #{tpu_custom_call.1} parent=0 // pred_check
    _
  $region3: #{tpu_custom_call.1} parent=0 // pred_check_branch
    %9 = sbr.rel (0) target = $region5
  $region4: #{tpu_custom_call.1} parent=0 // pred_region
    _
  $region5: #{tpu_custom_call.1} parent=0 // pred_fallthru
    _
  // Predicated region
  $region6: #{tpu_custom_call.1} parent=0 // pred_check
    _
  $region7: #{tpu_custom_call.1} parent=0 // pred_check_branch
    %11 = sbr.rel (0) target = $region9
  $region8: #{tpu_custom_call.1} parent=0 // pred_region
    _
  $region9: #{tpu_custom_call.1} parent=0 // pred_fallthru
    _
  // Predicated region
  $region10: #{tpu_custom_call.1} parent=0 // pred_check
    _
  $region11: #{tpu_custom_call.1} parent=0 // pred_check_branch
    %13 = sbr.rel (0) target = $region13
  $region12: #{tpu_custom_call.1} parent=0 // pred_region
    _
  $region13: #{tpu_custom_call.1} parent=0 // pred_fallthru
    _
  %v15 = vld [vmem:[%s0] sm:$0xff]
  %v16 = vld [vmem:[%s0 + $0x8] sm:$0xff]
  %v17 = vld [vmem:[%s0 + $0x10] sm:$0xff]
  %v18 = vld [vmem:[%s0 + $0x18] sm:$0xff]
  %v19 = vld [vmem:[%s0 + $0x20] sm:$0xff]
  %v20 = vld [vmem:[%s0 + $0x28] sm:$0xff]
  %v21 = vld [vmem:[%s0 + $0x30] sm:$0xff]
  %v22 = vld [vmem:[%s0 + $0x38] sm:$0xff]
  %v23 = vld [vmem:[%s0 + $0x40] sm:$0xff]
  %v24 = vld [vmem:[%s0 + $0x48] sm:$0xff]
  %v25 = vld [vmem:[%s0 + $0x50] sm:$0xff]
  %v26 = vld [vmem:[%s0 + $0x58] sm:$0xff]
  %v27 = vld [vmem:[%s0 + $0x60] sm:$0xff]
  %v28 = vld [vmem:[%s0 + $0x68] sm:$0xff]
  %v29 = vld [vmem:[%s0 + $0x70] sm:$0xff]
  %v30 = vld [vmem:[%s0 + $0x78] sm:$0xff]
  %v31 = vpack.c.bf16 %v16, %v15
  %v32 = vpack.c.bf16 %v18, %v17
  %v33 = vpack.c.bf16 %v20, %v19
  %v34 = vpack.c.bf16 %v22, %v21
  %v35 = vpack.c.bf16 %v24, %v23
  %v36 = vpack.c.bf16 %v26, %v25
  %v37 = vpack.c.bf16 %v28, %v27
  %v38 = vpack.c.bf16 %v30, %v29
  %v39 = vld [vmem:[%s1] sm:$0xf]
  %v40 = vld [vmem:[%s1 + $0x4] sm:$0xf]
  %v41 = vld [vmem:[%s1 + $0x8] sm:$0xf]
  %v42 = vld [vmem:[%s1 + $0xc] sm:$0xf]
  %v43 = vld [vmem:[%s2] sm:$0x1]
  %v45 = vlaneseq
  %v46 = vshrl.u32 %v45, 7
  %v47 = vsub.s32 0, %v46
  %v48 = vrot.slane %v43, %v47
  %v54 = vunpack.c.l.b16 %v39
  %v55 = vunpack.c.l.b16 %v40
  %v56 = vunpack.c.l.b16 %v41
  %v57 = vunpack.c.l.b16 %v42
  %v58 = vpack.c.b16 %v55, %v54
  %v59 = vpack.c.b16 %v57, %v56
  %vm62 = vcmask 261120
  %v64 = vsel %vm62, %v31, 0
  %v67 = vsel %vm62, %v32, 0
  %v70 = vsel %vm62, %v33, 0
  %v73 = vsel %vm62, %v34, 0
  %v76 = vsel %vm62, %v35, 0
  %v79 = vsel %vm62, %v36, 0
  %v82 = vsel %vm62, %v37, 0
  %v85 = vsel %vm62, %v38, 0
  %87 = vmatprep.subr.bf16.mxu0 0
  %88 = vmatpush1.bf16.msra.mxu0 %v58
  %89 = vmatprep.subr.bf16.mxu0 0
  %90 = vmatpush1.bf16.msra.mxu0 %v59
  %91 = vmatprep.subr.bf16.mxu0 0
  %92 = vmatpush1.bf16.msra.mxu0 0
  %93 = vmatprep.subr.bf16.mxu0 0
  %94 = vmatpush1.bf16.msra.mxu0 0
  %95 = vmatprep.subr.bf16.mxu0 0
  %96 = vmatpush1.bf16.msra.mxu0 0
  %97 = vmatprep.subr.bf16.mxu0 0
  %98 = vmatpush1.bf16.msra.mxu0 0
  %99 = vmatprep.subr.bf16.mxu0 0
  %100 = vmatpush1.bf16.msra.mxu0 0
  %101 = vmatprep.subr.bf16.mxu0 0
  %102 = vmatpush1.bf16.msra.mxu0 0
  %103 = vmatprep.subr.bf16.mxu0 0
  %104 = vmatpush1.bf16.msra.mxu0 0
  %105 = vmatprep.subr.bf16.mxu0 0
  %106 = vmatpush1.bf16.msra.mxu0 0
  %107 = vmatprep.subr.bf16.mxu0 0
  %108 = vmatpush1.bf16.msra.mxu0 0
  %109 = vmatprep.subr.bf16.mxu0 0
  %110 = vmatpush1.bf16.msra.mxu0 0
  %111 = vmatprep.subr.bf16.mxu0 0
  %112 = vmatpush1.bf16.msra.mxu0 0
  %113 = vmatprep.subr.bf16.mxu0 0
  %114 = vmatpush1.bf16.msra.mxu0 0
  %115 = vmatprep.subr.bf16.mxu0 0
  %116 = vmatpush1.bf16.msra.mxu0 0
  %117 = vmatprep.subr.bf16.mxu0 0
  %118 = vmatpush1.bf16.msra.mxu0 0
  %119 = vmatprep.mubr.bf16.mxu0 0
  %120 = vmatmul.mubr.bf16.gmra.mrb[0].mxu0 %v64
  %v121 = vpop.f32.mrb[0].mxu0
  %v122 = vadd.f32 %v48, %v121
  %v123 = vpop.f32.mrb[0].mxu0
  %v124 = vpop.f32.mrb[0].mxu0
  %v125 = vadd.f32 %v48, %v124
  %v126 = vpop.f32.mrb[0].mxu0
  %127 = vmatprep.mubr.bf16.mxu0 0
  %128 = vmatmul.mubr.bf16.gmra.mrb[0].mxu0 %v67
  %v129 = vpop.f32.mrb[0].mxu0
  %v130 = vadd.f32 %v48, %v129
  %v131 = vpop.f32.mrb[0].mxu0
  %v132 = vpop.f32.mrb[0].mxu0
  %v133 = vadd.f32 %v48, %v132
  %v134 = vpop.f32.mrb[0].mxu0
  %135 = vmatprep.mubr.bf16.mxu0 0
  %136 = vmatmul.mubr.bf16.gmra.mrb[0].mxu0 %v70
  %v137 = vpop.f32.mrb[0].mxu0
  %v138 = vadd.f32 %v48, %v137
  %v139 = vpop.f32.mrb[0].mxu0
  %v140 = vpop.f32.mrb[0].mxu0
  %v141 = vadd.f32 %v48, %v140
  %v142 = vpop.f32.mrb[0].mxu0
  %143 = vmatprep.mubr.bf16.mxu0 0
  %144 = vmatmul.mubr.bf16.gmra.mrb[0].mxu0 %v73
  %v145 = vpop.f32.mrb[0].mxu0
  %v146 = vadd.f32 %v48, %v145
  %v147 = vpop.f32.mrb[0].mxu0
  %v148 = vpop.f32.mrb[0].mxu0
  %v149 = vadd.f32 %v48, %v148
  %v150 = vpop.f32.mrb[0].mxu0
  %151 = vmatprep.mubr.bf16.mxu0 0
  %152 = vmatmul.mubr.bf16.gmra.mrb[0].mxu0 %v76
  %v153 = vpop.f32.mrb[0].mxu0
  %v154 = vadd.f32 %v48, %v153
  %v155 = vpop.f32.mrb[0].mxu0
  %v156 = vpop.f32.mrb[0].mxu0
  %v157 = vadd.f32 %v48, %v156
  %v158 = vpop.f32.mrb[0].mxu0
  %159 = vmatprep.mubr.bf16.mxu0 0
  %160 = vmatmul.mubr.bf16.gmra.mrb[0].mxu0 %v79
  %v161 = vpop.f32.mrb[0].mxu0
  %v162 = vadd.f32 %v48, %v161
  %v163 = vpop.f32.mrb[0].mxu0
  %v164 = vpop.f32.mrb[0].mxu0
  %v165 = vadd.f32 %v48, %v164
  %v166 = vpop.f32.mrb[0].mxu0
  %167 = vmatprep.mubr.bf16.mxu0 0
  %168 = vmatmul.mubr.bf16.gmra.mrb[0].mxu0 %v82
  %v169 = vpop.f32.mrb[0].mxu0
  %v170 = vadd.f32 %v48, %v169
  %v171 = vpop.f32.mrb[0].mxu0
  %v172 = vpop.f32.mrb[0].mxu0
  %v173 = vadd.f32 %v48, %v172
  %v174 = vpop.f32.mrb[0].mxu0
  %175 = vmatprep.mubr.bf16.mxu0 0
  %176 = vmatmul.mubr.bf16.gmra.mrb[0].mxu0 %v85
  %v177 = vpop.f32.mrb[0].mxu0
  %v178 = vadd.f32 %v48, %v177
  %v179 = vpop.f32.mrb[0].mxu0
  %v180 = vpop.f32.mrb[0].mxu0
  %v181 = vadd.f32 %v48, %v180
  %v182 = vpop.f32.mrb[0].mxu0
  %183 = vdwg.mxu0
  %vm184 = vcmask 785408
  %185 = vst.msk [vmem:[%s3] sm:$0xff] %vm184, %v122
  %186 = vst.msk [vmem:[%s3 + $0x8] sm:$0xff] %vm184, %v125
  %187 = vst.msk [vmem:[%s3 + $0x10] sm:$0xff] %vm184, %v130
  %188 = vst.msk [vmem:[%s3 + $0x18] sm:$0xff] %vm184, %v133
  %189 = vst.msk [vmem:[%s3 + $0x20] sm:$0xff] %vm184, %v138
  %190 = vst.msk [vmem:[%s3 + $0x28] sm:$0xff] %vm184, %v141
  %191 = vst.msk [vmem:[%s3 + $0x30] sm:$0xff] %vm184, %v146
  %192 = vst.msk [vmem:[%s3 + $0x38] sm:$0xff] %vm184, %v149
  %193 = vst.msk [vmem:[%s3 + $0x40] sm:$0xff] %vm184, %v154
  %194 = vst.msk [vmem:[%s3 + $0x48] sm:$0xff] %vm184, %v157
  %195 = vst.msk [vmem:[%s3 + $0x50] sm:$0xff] %vm184, %v162
  %196 = vst.msk [vmem:[%s3 + $0x58] sm:$0xff] %vm184, %v165
  %197 = vst.msk [vmem:[%s3 + $0x60] sm:$0xff] %vm184, %v170
  %198 = vst.msk [vmem:[%s3 + $0x68] sm:$0xff] %vm184, %v173
  %199 = vst.msk [vmem:[%s3 + $0x70] sm:$0xff] %vm184, %v178
  %200 = vst.msk [vmem:[%s3 + $0x78] sm:$0xff] %vm184, %v181
  // Predicated region
  $region14: #{tpu_custom_call.1} parent=0 // pred_check
    _
  $region15: #{tpu_custom_call.1} parent=0 // pred_check_branch
    %202 = sbr.rel (0) target = $region17
  $region16: #{tpu_custom_call.1} parent=0 // pred_region
    _
  $region17: #{tpu_custom_call.1} parent=0 // pred_fallthru
    _
  // Predicated region
  $region18: #{tpu_custom_call.1} parent=0 // pred_check
    _
  $region19: #{tpu_custom_call.1} parent=0 // pred_check_branch
    %204 = sbr.rel (0) target = $region21
  $region20: #{tpu_custom_call.1} parent=0 // pred_region
    _
  $region21: #{tpu_custom_call.1} parent=0 // pred_fallthru
    _

</llo_original>
